<compile_context>
chip_gen: v6e
topology: v6e:2x2x1
jax: 0.10.0
libtpu: 0.0.40
codegen_flags: <defaults>
</compile_context>

<pallas_src>
import jax
import jax.numpy as jnp
from jax.experimental import pallas as pl
from jax.experimental.pallas import tpu as pltpu

IN_DIM = 1024
H1 = 128
H2 = 64
OUT = 1


def _critic_kernel(x_ref, w1_ref, b1_ref, w2_ref, b2_ref, w3_ref, b3_ref, o_ref):
    # Whole hot path (2 MXU matmuls + ReLUs + the tiny last layer) runs in one
    # grid step, entirely resident in VMEM, with f32 accumulation.
    x = x_ref[...]                                            # (T, 1024)

    h1 = jnp.dot(x, w1_ref[...], preferred_element_type=jnp.float32)
    h1 = jnp.maximum(h1 + b1_ref[...], 0.0)                   # (T, 128)

    h2 = jnp.dot(h1, w2_ref[...], preferred_element_type=jnp.float32)
    h2 = jnp.maximum(h2 + b2_ref[...], 0.0)                   # (T, 64)

    # Linear(64 -> 1): contract the feature axis of both operands (NT form) so
    # the result comes out as a lane-dense (1, T) row, not a (T, 1) column.
    out_row = jax.lax.dot_general(
        w3_ref[...], h2,                                      # (1,64) . (T,64)
        dimension_numbers=(((1,), (1,)), ((), ())),
        preferred_element_type=jnp.float32,
    )                                                         # (1, T)
    out_row = out_row + b3_ref[...]                           # b3 is (1, 1)

    o_ref[...] = out_row[None].astype(o_ref.dtype)            # (1, 1, T)


def _default_batch_tile(B: int) -> int:
    # Lane/sublane friendly (multiple of 128).  For B > 128 aim for >= 2 grid
    # steps (DMA/compute overlap + v7x megacore), capped at 1024 rows so the
    # double-buffered f32 x tile stays at 8 MiB on every TPU generation.
    if B <= 128:
        return 128
    half = 128 * pl.cdiv(pl.cdiv(B, 2), 128)
    return int(min(1024, half))


def critic_forward(x, params, *, batch_tile=None):
    """CriticModel forward pass via a single pallas_call.

    x: (B, 1024) float32
    params: w1 (1024,128), b1 (1,128), w2 (128,64), b2 (1,64),
            w3 (1,64)  [PyTorch (out,in) layout],  b3 (1,1)
    returns: (B, 1) float32
    """
    B = x.shape[0]
    if batch_tile is None:
        batch_tile = _default_batch_tile(B)
    num_tiles = int(pl.cdiv(B, batch_tile))
    Bp = num_tiles * batch_tile
    if Bp != B:
        # Pad ragged batches up to a whole number of tiles (pad rows discarded).
        x = jnp.pad(x, ((0, Bp - B), (0, 0)))

    w1, b1, w2, b2, w3, b3 = (
        params["w1"], params["b1"], params["w2"],
        params["b2"], params["w3"], params["b3"],
    )

    # Batch axis tiled over the grid; weights/biases are grid-invariant and
    # single-buffered (constant block index -> no re-fetch, no double buffer).
    single = pl.Buffered(1)
    x_spec = pl.BlockSpec((batch_tile, IN_DIM), lambda i: (i, 0))
    w1_spec = pl.BlockSpec((IN_DIM, H1), lambda i: (0, 0), pipeline_mode=single)
    b1_spec = pl.BlockSpec((1, H1), lambda i: (0, 0), pipeline_mode=single)
    w2_spec = pl.BlockSpec((H1, H2), lambda i: (0, 0), pipeline_mode=single)
    b2_spec = pl.BlockSpec((1, H2), lambda i: (0, 0), pipeline_mode=single)
    w3_spec = pl.BlockSpec((1, H2), lambda i: (0, 0), pipeline_mode=single)
    b3_spec = pl.BlockSpec((1, 1), lambda i: (0, 0), pipeline_mode=single)
    # Lane-dense output slab: (num_tiles, 1, batch_tile); batch on the lane dim.
    o_spec = pl.BlockSpec((1, 1, batch_tile), lambda i: (i, 0, 0))

    weight_bytes = 4 * (IN_DIM * H1 + H1 * H2 + H2 * OUT + H1 + H2 + OUT)
    cost = pl.CostEstimate(
        flops=2 * Bp * (IN_DIM * H1 + H1 * H2 + H2 * OUT),
        transcendentals=0,
        bytes_accessed=Bp * IN_DIM * 4 + weight_bytes + Bp * OUT * 4,
    )

    out = pl.pallas_call(
        _critic_kernel,
        out_shape=jax.ShapeDtypeStruct((num_tiles, 1, batch_tile), x.dtype),
        grid_spec=pltpu.PrefetchScalarGridSpec(
            num_scalar_prefetch=0,
            grid=(num_tiles,),
            in_specs=[x_spec, w1_spec, b1_spec, w2_spec, b2_spec, w3_spec, b3_spec],
            out_specs=o_spec,
        ),
        compiler_params=pltpu.CompilerParams(
            dimension_semantics=("parallel",),
            vmem_limit_bytes=32 * 1024 * 1024,
        ),
        cost_estimate=cost,
    )(x, w1, b1, w2, b2, w3, b3)

    # (num_tiles, 1, batch_tile) row-major flatten == padded batch order.
    return out.reshape(Bp, OUT)[:B]


def init_params(key):
    """Deterministic synthetic parameters matching nn.Linear init shapes.

    w1/w2 are stored as (in, out) so the kernel computes x @ W directly;
    w3 is kept in PyTorch (out, in) = (1, 64) layout for the NT-form last layer.
    """
    k1, k2, k3, k4, k5, k6 = jax.random.split(key, 6)

    def lin_init(kw, kb, fan_in, fan_out):
        bound = 1.0 / jnp.sqrt(fan_in)
        w = jax.random.uniform(kw, (fan_in, fan_out), jnp.float32, -bound, bound)
        b = jax.random.uniform(kb, (1, fan_out), jnp.float32, -bound, bound)
        return w, b

    w1, b1 = lin_init(k1, k2, IN_DIM, H1)
    w2, b2 = lin_init(k3, k4, H1, H2)
    w3, b3 = lin_init(k5, k6, H2, OUT)
    return dict(w1=w1, b1=b1, w2=w2, b2=b2, w3=w3.T, b3=b3)  # w3.T -> (1, 64)


def reference_forward(x, p):
    h1 = jnp.maximum(x @ p["w1"] + p["b1"], 0.0)
    h2 = jnp.maximum(h1 @ p["w2"] + p["b2"], 0.0)
    return h2 @ p["w3"].T + p["b3"]


if __name__ == "__main__":
    key = jax.random.PRNGKey(0)
    kp, kx = jax.random.split(key)

    params = init_params(kp)
    B = 8
    x = jax.random.normal(kx, (B, IN_DIM), jnp.float32)

    out = critic_forward(x, params)
    out = jax.block_until_ready(out)

    ref = reference_forward(x, params)
    assert out.shape == (B, OUT), out.shape
    assert jnp.allclose(out, ref, atol=1e-4, rtol=1e-4), (
        float(jnp.max(jnp.abs(out - ref))))

    print("KERNEL_OK")
</pallas_src>

<mosaic_0001>
module attributes {stable_mosaic.version = 11 : i64} {
  func.func @_critic_kernel(%arg0: i32, %arg1: memref<128x1024xf32, #tpu.memory_space<vmem>>, %arg2: memref<1024x128xf32, #tpu.memory_space<vmem>>, %arg3: memref<1x128xf32, #tpu.memory_space<vmem>>, %arg4: memref<128x64xf32, #tpu.memory_space<vmem>>, %arg5: memref<1x64xf32, #tpu.memory_space<vmem>>, %arg6: memref<1x64xf32, #tpu.memory_space<vmem>>, %arg7: memref<1x1xf32, #tpu.memory_space<vmem>>, %arg8: memref<1x1x128xf32, #tpu.memory_space<vmem>>) attributes {dimension_semantics = [#tpu.dimension_semantics<parallel>], iteration_bounds = array<i64: 1>, scalar_prefetch = 0 : i64, scratch_operands = 0 : i64, tpu.core_type = #tpu.core_type<tc>, window_params = [{transform_indices = @transform_0, window_bounds = array<i64: 128, 1024>}, {pipeline_mode = #tpu.pipeline_mode<synchronous>, transform_indices = @transform_1, window_bounds = array<i64: 1024, 128>}, {pipeline_mode = #tpu.pipeline_mode<synchronous>, transform_indices = @transform_2, window_bounds = array<i64: 1, 128>}, {pipeline_mode = #tpu.pipeline_mode<synchronous>, transform_indices = @transform_3, window_bounds = array<i64: 128, 64>}, {pipeline_mode = #tpu.pipeline_mode<synchronous>, transform_indices = @transform_4, window_bounds = array<i64: 1, 64>}, {pipeline_mode = #tpu.pipeline_mode<synchronous>, transform_indices = @transform_5, window_bounds = array<i64: 1, 64>}, {pipeline_mode = #tpu.pipeline_mode<synchronous>, transform_indices = @transform_6, window_bounds = array<i64: 1, 1>}, {transform_indices = @transform_7, window_bounds = array<i64: 1, 1, 128>}]} {
    %c0 = arith.constant 0 : index
    %c0_0 = arith.constant 0 : index
    %0 = vector.load %arg1[%c0, %c0_0] : memref<128x1024xf32, #tpu.memory_space<vmem>>, vector<128x1024xf32>
    %c0_1 = arith.constant 0 : index
    %c0_2 = arith.constant 0 : index
    %1 = vector.load %arg2[%c0_1, %c0_2] : memref<1024x128xf32, #tpu.memory_space<vmem>>, vector<1024x128xf32>
    %cst = arith.constant dense<0.000000e+00> : vector<128x128xf32>
    %2 = tpu.matmul %0, %1, %cst {dimension_numbers = #tpu.dot_dimension_numbers<[1], [0], [0], [1], [0, 0, 1, 1], [], []>} : vector<128x1024xf32>, vector<1024x128xf32>, vector<128x128xf32> -> vector<128x128xf32>
    %c0_3 = arith.constant 0 : index
    %c0_4 = arith.constant 0 : index
    %3 = vector.load %arg3[%c0_3, %c0_4] : memref<1x128xf32, #tpu.memory_space<vmem>>, vector<1x128xf32>
    %4 = vector.broadcast %3 : vector<1x128xf32> to vector<128x128xf32>
    %5 = arith.addf %2, %4 : vector<128x128xf32>
    %cst_5 = arith.constant 0.000000e+00 : f32
    %6 = vector.broadcast %cst_5 : f32 to vector<128x128xf32>
    %7 = arith.maximumf %5, %6 : vector<128x128xf32>
    %c0_6 = arith.constant 0 : index
    %c0_7 = arith.constant 0 : index
    %8 = vector.load %arg4[%c0_6, %c0_7] : memref<128x64xf32, #tpu.memory_space<vmem>>, vector<128x64xf32>
    %cst_8 = arith.constant dense<0.000000e+00> : vector<128x64xf32>
    %9 = tpu.matmul %7, %8, %cst_8 {dimension_numbers = #tpu.dot_dimension_numbers<[1], [0], [0], [1], [0, 0, 1, 1], [], []>} : vector<128x128xf32>, vector<128x64xf32>, vector<128x64xf32> -> vector<128x64xf32>
    %c0_9 = arith.constant 0 : index
    %c0_10 = arith.constant 0 : index
    %10 = vector.load %arg5[%c0_9, %c0_10] : memref<1x64xf32, #tpu.memory_space<vmem>>, vector<1x64xf32>
    %11 = vector.broadcast %10 : vector<1x64xf32> to vector<128x64xf32>
    %12 = arith.addf %9, %11 : vector<128x64xf32>
    %cst_11 = arith.constant 0.000000e+00 : f32
    %13 = vector.broadcast %cst_11 : f32 to vector<128x64xf32>
    %14 = arith.maximumf %12, %13 : vector<128x64xf32>
    %c0_12 = arith.constant 0 : index
    %c0_13 = arith.constant 0 : index
    %15 = vector.load %arg6[%c0_12, %c0_13] : memref<1x64xf32, #tpu.memory_space<vmem>>, vector<1x64xf32>
    %cst_14 = arith.constant dense<0.000000e+00> : vector<1x128xf32>
    %16 = tpu.matmul %15, %14, %cst_14 {dimension_numbers = #tpu.dot_dimension_numbers<[1], [1], [0], [0], [0, 0, 1, 0], [], []>} : vector<1x64xf32>, vector<128x64xf32>, vector<1x128xf32> -> vector<1x128xf32>
    %c0_15 = arith.constant 0 : index
    %c0_16 = arith.constant 0 : index
    %17 = vector.load %arg7[%c0_15, %c0_16] : memref<1x1xf32, #tpu.memory_space<vmem>>, vector<1x1xf32>
    %18 = vector.broadcast %17 : vector<1x1xf32> to vector<1x128xf32>
    %19 = arith.addf %16, %18 : vector<1x128xf32>
    %20 = vector.shape_cast %19 : vector<1x128xf32> to vector<1x1x128xf32>
    %c0_17 = arith.constant 0 : index
    %c0_18 = arith.constant 0 : index
    %c0_19 = arith.constant 0 : index
    %21 = vector.load %arg8[%c0_17, %c0_18, %c0_19] : memref<1x1x128xf32, #tpu.memory_space<vmem>>, vector<1x1x128xf32>
    tpu.vector_store %arg8[%c0_17, %c0_18, %c0_19], %20 {strides = array<i32>} : memref<1x1x128xf32, #tpu.memory_space<vmem>>, vector<1x1x128xf32>,
    return
  }
  func.func @transform_0(%arg0: i32) -> (i32, i32) {
    %c0_i32 = arith.constant 0 : i32
    %c0_i32_0 = arith.constant 0 : i32
    return %arg0, %c0_i32 : i32, i32
  }
  func.func @transform_1(%arg0: i32) -> (i32, i32) {
    %c0_i32 = arith.constant 0 : i32
    %c0_i32_0 = arith.constant 0 : i32
    %c0_i32_1 = arith.constant 0 : i32
    return %c0_i32, %c0_i32_0 : i32, i32
  }
  func.func @transform_2(%arg0: i32) -> (i32, i32) {
    %c0_i32 = arith.constant 0 : i32
    %c0_i32_0 = arith.constant 0 : i32
    %c0_i32_1 = arith.constant 0 : i32
    return %c0_i32, %c0_i32_0 : i32, i32
  }
  func.func @transform_3(%arg0: i32) -> (i32, i32) {
    %c0_i32 = arith.constant 0 : i32
    %c0_i32_0 = arith.constant 0 : i32
    %c0_i32_1 = arith.constant 0 : i32
    return %c0_i32, %c0_i32_0 : i32, i32
  }
  func.func @transform_4(%arg0: i32) -> (i32, i32) {
    %c0_i32 = arith.constant 0 : i32
    %c0_i32_0 = arith.constant 0 : i32
    %c0_i32_1 = arith.constant 0 : i32
    return %c0_i32, %c0_i32_0 : i32, i32
  }
  func.func @transform_5(%arg0: i32) -> (i32, i32) {
    %c0_i32 = arith.constant 0 : i32
    %c0_i32_0 = arith.constant 0 : i32
    %c0_i32_1 = arith.constant 0 : i32
    return %c0_i32, %c0_i32_0 : i32, i32
  }
  func.func @transform_6(%arg0: i32) -> (i32, i32) {
    %c0_i32 = arith.constant 0 : i32
    %c0_i32_0 = arith.constant 0 : i32
    %c0_i32_1 = arith.constant 0 : i32
    return %c0_i32, %c0_i32_0 : i32, i32
  }
  func.func @transform_7(%arg0: i32) -> (i32, i32, i32) {
    %c0_i32 = arith.constant 0 : i32
    %c0_i32_0 = arith.constant 0 : i32
    %c0_i32_1 = arith.constant 0 : i32
    return %arg0, %c0_i32, %c0_i32_0 : i32, i32, i32
  }
}

</mosaic_0001>

<llo_original>
// kernel: tpu_custom_call.1
$region0: #{tpu_custom_call.1}
  #allocation0 [shape = 'u32[]', space=smem, size = 0x4, offset = 0x4, fixed_abs, tag = 'smem constant byte address 0x4 - core index']
  #allocation1 [shape = 'u32[144,128]{1,0:T(1,128)}', space=vmem, size = 0x12000, scoped, tag = 'internal scratch']
  #allocation2 [shape = 'f32[1,1]{1,0:T(1,128)S(1)}', space=vmem, size = 0x200, scoped, tag = 'scoped memory for tpu_custom_call.1']
  %s0 = inlined_call_operand.hbm [shape: f32[128,1024], index: 0, kind: input, shape index: {}]
  %s1 = inlined_call_operand.hbm [shape: f32[1024,128], index: 1, kind: input, shape index: {}]
  %s2 = inlined_call_operand.vmem [shape: f32[1,128], index: 2, kind: input, shape index: {}]
  %s3 = inlined_call_operand.vmem [shape: f32[128,64], index: 3, kind: input, shape index: {}]
  %s4 = inlined_call_operand.vmem [shape: f32[1,64], index: 4, kind: input, shape index: {}]
  %s5 = inlined_call_operand.vmem [shape: f32[1,64], index: 5, kind: input, shape index: {}]
  %s6 = inlined_call_operand.<no memory space> [shape: f32[1,1], index: 6, kind: input, shape index: {}]
  %s7 = inlined_call_operand.hbm [shape: f32[1,1,128], index: 7, kind: output, shape index: {}]
  %s8 = sld [smem:[#allocation0]]
  $region46: #{tpu_custom_call.1} parent=0
    _
  %s10 = ssub.s32 1, %s8
  %s11 = scalar_select 0, %s10, %s8
  %v12 = vstv %s6
  %13 = vst [vmem:[#allocation2] sm:$0x1] %v12
  $region1: #{tpu_custom_call.1} parent=0
    #allocation3 [shape = 'u8[524288]{0}', space=vmem, size = 0x80000, scoped, tag = 'input window, operand 0, single buffered']
    #allocation4 [shape = 's32[1]{0}', space=sflag, size = 0x4, scoped, tag = 'scoped memory for tpu_custom_call.1']
    #allocation5 [shape = 's32[1]{0}', space=sflag, size = 0x4, scoped, tag = 'scoped memory for tpu_custom_call.1']
    #allocation6 [shape = 'u8[524288]{0}', space=vmem, size = 0x80000, scoped, tag = 'input window, operand 1, single buffered']
    #allocation7 [shape = 's32[1]{0}', space=sflag, size = 0x4, scoped, tag = 'scoped memory for tpu_custom_call.1']
    #allocation8 [shape = 'u8[512]{0}', space=vmem, size = 0x400, scoped, tag = 'output window, operand 0, single buffered']
    %14 = vsyncpa [#allocation4], 0
    %15 = vsyncpa [#allocation7], 0
    %16 = vsyncpa [#allocation5], 0
    // Predicated region
    $region2: #{tpu_custom_call.1} parent=1 // pred_check
      _
    $region3: #{tpu_custom_call.1} parent=1 // pred_check_branch
      %18 = sbr.rel (0) target = $region5
    $region4: #{tpu_custom_call.1} parent=1 // pred_region
      %s20 = ssub.s32 16384, 16384
      %21 = vsyncadd [#allocation4], %s20
      %s22 = sshll.u32 [#allocation3], 4
      %s23 = int_to_ptr.vmem [resolvable:$true] %s22
      %28 = dma.hbm_to_vmem [thread:$0]  %s0, 16384, %s23, [#allocation4], 1024, 1024, 64
    $region5: #{tpu_custom_call.1} parent=1 // pred_fallthru
      _
    // Predicated region
    $region6: #{tpu_custom_call.1} parent=1 // pred_check
      _
    $region7: #{tpu_custom_call.1} parent=1 // pred_check_branch
      %30 = sbr.rel (0) target = $region9
    $region8: #{tpu_custom_call.1} parent=1 // pred_region
      %s32 = ssub.s32 16384, 16384
      %33 = vsyncadd [#allocation7], %s32
      %s34 = sshll.u32 [#allocation6], 4
      %s35 = int_to_ptr.vmem [resolvable:$true] %s34
      %40 = dma.hbm_to_vmem [thread:$0]  %s1, 16384, %s35, [#allocation7], 128, 128, 8
    $region9: #{tpu_custom_call.1} parent=1 // pred_fallthru
      _
    // Predicated region
    $region10: #{tpu_custom_call.1} parent=1 // pred_check
      _
    $region11: #{tpu_custom_call.1} parent=1 // pred_check_branch
      %42 = sbr.rel (0) target = $region13
    $region12: #{tpu_custom_call.1} parent=1 // pred_region
      _
    $region13: #{tpu_custom_call.1} parent=1 // pred_fallthru
      _
    // Predicated region
    $region14: #{tpu_custom_call.1} parent=1 // pred_check
      _
    $region15: #{tpu_custom_call.1} parent=1 // pred_check_branch
      %44 = sbr.rel (0) target = $region17
    $region16: #{tpu_custom_call.1} parent=1 // pred_region
      _
    $region17: #{tpu_custom_call.1} parent=1 // pred_fallthru
      _
    // Predicated region
    $region18: #{tpu_custom_call.1} parent=1 // pred_check
      _
    $region19: #{tpu_custom_call.1} parent=1 // pred_check_branch
      %46 = sbr.rel (0) target = $region21
    $region20: #{tpu_custom_call.1} parent=1 // pred_region
      _
    $region21: #{tpu_custom_call.1} parent=1 // pred_fallthru
      _
    // Predicated region
    $region22: #{tpu_custom_call.1} parent=1 // pred_check
      _
    $region23: #{tpu_custom_call.1} parent=1 // pred_check_branch
      %48 = sbr.rel (0) target = $region25
    $region24: #{tpu_custom_call.1} parent=1 // pred_region
      _
    $region25: #{tpu_custom_call.1} parent=1 // pred_fallthru
      _
    // Predicated region
    $region26: #{tpu_custom_call.1} parent=1 // pred_check
      _
    $region27: #{tpu_custom_call.1} parent=1 // pred_check_branch
      %50 = sbr.rel (0) target = $region29
    $region28: #{tpu_custom_call.1} parent=1 // pred_region
      _
    $region29: #{tpu_custom_call.1} parent=1 // pred_fallthru
      _
    // Predicated region
    $region30: #{tpu_custom_call.1} parent=1 // pred_check
      _
    $region31: #{tpu_custom_call.1} parent=1 // pred_check_branch
      %52 = sbr.rel (0) target = $region33
    $region32: #{tpu_custom_call.1} parent=1 // pred_region
      %53 = dma.done [#allocation4], 16384
    $region33: #{tpu_custom_call.1} parent=1 // pred_fallthru
      _
    // Predicated region
    $region34: #{tpu_custom_call.1} parent=1 // pred_check
      _
    $region35: #{tpu_custom_call.1} parent=1 // pred_check_branch
      %55 = sbr.rel (0) target = $region37
    $region36: #{tpu_custom_call.1} parent=1 // pred_region
      %56 = dma.done [#allocation7], 16384
    $region37: #{tpu_custom_call.1} parent=1 // pred_fallthru
      _
    %v57 = vld [vmem:[#allocation3] sm:$0xff]
    %v58 = vld [vmem:[#allocation3 + $0x8] sm:$0xff]
    %v59 = vld [vmem:[#allocation3 + $0x10] sm:$0xff]
    %v60 = vld [vmem:[#allocation3 + $0x18] sm:$0xff]
    %v61 = vld [vmem:[#allocation3 + $0x20] sm:$0xff]
    %v62 = vld [vmem:[#allocation3 + $0x28] sm:$0xff]
    %v63 = vld [vmem:[#allocation3 + $0x30] sm:$0xff]
    %v64 = vld [vmem:[#allocation3 + $0x38] sm:$0xff]
    %v65 = vld [vmem:[#allocation3 + $0x40] sm:$0xff]
    %v66 = vld [vmem:[#allocation3 + $0x48] sm:$0xff]
    %v67 = vld [vmem:[#allocation3 + $0x50] sm:$0xff]
    %v68 = vld [vmem:[#allocation3 + $0x58] sm:$0xff]
    %v69 = vld [vmem:[#allocation3 + $0x60] sm:$0xff]
    %v70 = vld [vmem:[#allocation3 + $0x68] sm:$0xff]
    %v71 = vld [vmem:[#allocation3 + $0x70] sm:$0xff]
    %v72 = vld [vmem:[#allocation3 + $0x78] sm:$0xff]
    %v73 = vld [vmem:[#allocation3 + $0x80] sm:$0xff]
    %v74 = vld [vmem:[#allocation3 + $0x88] sm:$0xff]
    %v75 = vld [vmem:[#allocation3 + $0x90] sm:$0xff]
    %v76 = vld [vmem:[#allocation3 + $0x98] sm:$0xff]
    %v77 = vld [vmem:[#allocation3 + $0xa0] sm:$0xff]
    %v78 = vld [vmem:[#allocation3 + $0xa8] sm:$0xff]
    %v79 = vld [vmem:[#allocation3 + $0xb0] sm:$0xff]
    %v80 = vld [vmem:[#allocation3 + $0xb8] sm:$0xff]
    %v81 = vld [vmem:[#allocation3 + $0xc0] sm:$0xff]
    %v82 = vld [vmem:[#allocation3 + $0xc8] sm:$0xff]
    %v83 = vld [vmem:[#allocation3 + $0xd0] sm:$0xff]
    %v84 = vld [vmem:[#allocation3 + $0xd8] sm:$0xff]
    %v85 = vld [vmem:[#allocation3 + $0xe0] sm:$0xff]
    %v86 = vld [vmem:[#allocation3 + $0xe8] sm:$0xff]
    %v87 = vld [vmem:[#allocation3 + $0xf0] sm:$0xff]
    %v88 = vld [vmem:[#allocation3 + $0xf8] sm:$0xff]
    %v89 = vld [vmem:[#allocation3 + $0x100] sm:$0xff]
    %v90 = vld [vmem:[#allocation3 + $0x108] sm:$0xff]
    %v91 = vld [vmem:[#allocation3 + $0x110] sm:$0xff]
    %v92 = vld [vmem:[#allocation3 + $0x118] sm:$0xff]
    %v93 = vld [vmem:[#allocation3 + $0x120] sm:$0xff]
    %v94 = vld [vmem:[#allocation3 + $0x128] sm:$0xff]
    %v95 = vld [vmem:[#allocation3 + $0x130] sm:$0xff]
    %v96 = vld [vmem:[#allocation3 + $0x138] sm:$0xff]
    %v97 = vld [vmem:[#allocation3 + $0x140] sm:$0xff]
    %v98 = vld [vmem:[#allocation3 + $0x148] sm:$0xff]
    %v99 = vld [vmem:[#allocation3 + $0x150] sm:$0xff]
    %v100 = vld [vmem:[#allocation3 + $0x158] sm:$0xff]
    %v101 = vld [vmem:[#allocation3 + $0x160] sm:$0xff]
    %v102 = vld [vmem:[#allocation3 + $0x168] sm:$0xff]
    %v103 = vld [vmem:[#allocation3 + $0x170] sm:$0xff]
    %v104 = vld [vmem:[#allocation3 + $0x178] sm:$0xff]
    %v105 = vld [vmem:[#allocation3 + $0x180] sm:$0xff]
    %v106 = vld [vmem:[#allocation3 + $0x188] sm:$0xff]
    %v107 = vld [vmem:[#allocation3 + $0x190] sm:$0xff]
    %v108 = vld [vmem:[#allocation3 + $0x198] sm:$0xff]
    %v109 = vld [vmem:[#allocation3 + $0x1a0] sm:$0xff]
    %v110 = vld [vmem:[#allocation3 + $0x1a8] sm:$0xff]
    %v111 = vld [vmem:[#allocation3 + $0x1b0] sm:$0xff]
    %v112 = vld [vmem:[#allocation3 + $0x1b8] sm:$0xff]
    %v113 = vld [vmem:[#allocation3 + $0x1c0] sm:$0xff]
    %v114 = vld [vmem:[#allocation3 + $0x1c8] sm:$0xff]
    %v115 = vld [vmem:[#allocation3 + $0x1d0] sm:$0xff]
    %v116 = vld [vmem:[#allocation3 + $0x1d8] sm:$0xff]
    %v117 = vld [vmem:[#allocation3 + $0x1e0] sm:$0xff]
    %v118 = vld [vmem:[#allocation3 + $0x1e8] sm:$0xff]
    %v119 = vld [vmem:[#allocation3 + $0x1f0] sm:$0xff]
    %v120 = vld [vmem:[#allocation3 + $0x1f8] sm:$0xff]
    %v121 = vld [vmem:[#allocation3 + $0x200] sm:$0xff]
    %v122 = vld [vmem:[#allocation3 + $0x208] sm:$0xff]
    %v123 = vld [vmem:[#allocation3 + $0x210] sm:$0xff]
    %v124 = vld [vmem:[#allocation3 + $0x218] sm:$0xff]
    %v125 = vld [vmem:[#allocation3 + $0x220] sm:$0xff]
    %v126 = vld [vmem:[#allocation3 + $0x228] sm:$0xff]
    %v127 = vld [vmem:[#allocation3 + $0x230] sm:$0xff]
    %v128 = vld [vmem:[#allocation3 + $0x238] sm:$0xff]
    %v129 = vld [vmem:[#allocation3 + $0x240] sm:$0xff]
    %v130 = vld [vmem:[#allocation3 + $0x248] sm:$0xff]
    %v131 = vld [vmem:[#allocation3 + $0x250] sm:$0xff]
    %v132 = vld [vmem:[#allocation3 + $0x258] sm:$0xff]
    %v133 = vld [vmem:[#allocation3 + $0x260] sm:$0xff]
    %v134 = vld [vmem:[#allocation3 + $0x268] sm:$0xff]
    %v135 = vld [vmem:[#allocation3 + $0x270] sm:$0xff]
    %v136 = vld [vmem:[#allocation3 + $0x278] sm:$0xff]
    %v137 = vld [vmem:[#allocation3 + $0x280] sm:$0xff]
    %v138 = vld [vmem:[#allocation3 + $0x288] sm:$0xff]
    %v139 = vld [vmem:[#allocation3 + $0x290] sm:$0xff]
    %v140 = vld [vmem:[#allocation3 + $0x298] sm:$0xff]
    %v141 = vld [vmem:[#allocation3 + $0x2a0] sm:$0xff]
    %v142 = vld [vmem:[#allocation3 + $0x2a8] sm:$0xff]
    %v143 = vld [vmem:[#allocation3 + $0x2b0] sm:$0xff]
    %v144 = vld [vmem:[#allocation3 + $0x2b8] sm:$0xff]
    %v145 = vld [vmem:[#allocation3 + $0x2c0] sm:$0xff]
    %v146 = vld [vmem:[#allocation3 + $0x2c8] sm:$0xff]
    %v147 = vld [vmem:[#allocation3 + $0x2d0] sm:$0xff]
    %v148 = vld [vmem:[#allocation3 + $0x2d8] sm:$0xff]
    %v149 = vld [vmem:[#allocation3 + $0x2e0] sm:$0xff]
    %v150 = vld [vmem:[#allocation3 + $0x2e8] sm:$0xff]
    %v151 = vld [vmem:[#allocation3 + $0x2f0] sm:$0xff]
    %v152 = vld [vmem:[#allocation3 + $0x2f8] sm:$0xff]
    %v153 = vld [vmem:[#allocation3 + $0x300] sm:$0xff]
    %v154 = vld [vmem:[#allocation3 + $0x308] sm:$0xff]
    %v155 = vld [vmem:[#allocation3 + $0x310] sm:$0xff]
    %v156 = vld [vmem:[#allocation3 + $0x318] sm:$0xff]
    %v157 = vld [vmem:[#allocation3 + $0x320] sm:$0xff]
    %v158 = vld [vmem:[#allocation3 + $0x328] sm:$0xff]
    %v159 = vld [vmem:[#allocation3 + $0x330] sm:$0xff]
    %v160 = vld [vmem:[#allocation3 + $0x338] sm:$0xff]
    %v161 = vld [vmem:[#allocation3 + $0x340] sm:$0xff]
    %v162 = vld [vmem:[#allocation3 + $0x348] sm:$0xff]
    %v163 = vld [vmem:[#allocation3 + $0x350] sm:$0xff]
    %v164 = vld [vmem:[#allocation3 + $0x358] sm:$0xff]
    %v165 = vld [vmem:[#allocation3 + $0x360] sm:$0xff]
    %v166 = vld [vmem:[#allocation3 + $0x368] sm:$0xff]
    %v167 = vld [vmem:[#allocation3 + $0x370] sm:$0xff]
    %v168 = vld [vmem:[#allocation3 + $0x378] sm:$0xff]
    %v169 = vld [vmem:[#allocation3 + $0x380] sm:$0xff]
    %v170 = vld [vmem:[#allocation3 + $0x388] sm:$0xff]
    %v171 = vld [vmem:[#allocation3 + $0x390] sm:$0xff]
    %v172 = vld [vmem:[#allocation3 + $0x398] sm:$0xff]
    %v173 = vld [vmem:[#allocation3 + $0x3a0] sm:$0xff]
    %v174 = vld [vmem:[#allocation3 + $0x3a8] sm:$0xff]
    %v175 = vld [vmem:[#allocation3 + $0x3b0] sm:$0xff]
    %v176 = vld [vmem:[#allocation3 + $0x3b8] sm:$0xff]
    %v177 = vld [vmem:[#allocation3 + $0x3c0] sm:$0xff]
    %v178 = vld [vmem:[#allocation3 + $0x3c8] sm:$0xff]
    %v179 = vld [vmem:[#allocation3 + $0x3d0] sm:$0xff]
    %v180 = vld [vmem:[#allocation3 + $0x3d8] sm:$0xff]
    %v181 = vld [vmem:[#allocation3 + $0x3e0] sm:$0xff]
    %v182 = vld [vmem:[#allocation3 + $0x3e8] sm:$0xff]
    %v183 = vld [vmem:[#allocation3 + $0x3f0] sm:$0xff]
    %v184 = vld [vmem:[#allocation3 + $0x3f8] sm:$0xff]
    %v185 = vld [vmem:[#allocation6] sm:$0xff]
    %v186 = vld [vmem:[#allocation6 + $0x8] sm:$0xff]
    %v187 = vld [vmem:[#allocation6 + $0x10] sm:$0xff]
    %v188 = vld [vmem:[#allocation6 + $0x18] sm:$0xff]
    %v189 = vld [vmem:[#allocation6 + $0x20] sm:$0xff]
    %v190 = vld [vmem:[#allocation6 + $0x28] sm:$0xff]
    %v191 = vld [vmem:[#allocation6 + $0x30] sm:$0xff]
    %v192 = vld [vmem:[#allocation6 + $0x38] sm:$0xff]
    %v193 = vld [vmem:[#allocation6 + $0x40] sm:$0xff]
    %v194 = vld [vmem:[#allocation6 + $0x48] sm:$0xff]
    %v195 = vld [vmem:[#allocation6 + $0x50] sm:$0xff]
    %v196 = vld [vmem:[#allocation6 + $0x58] sm:$0xff]
    %v197 = vld [vmem:[#allocation6 + $0x60] sm:$0xff]
    %v198 = vld [vmem:[#allocation6 + $0x68] sm:$0xff]
    %v199 = vld [vmem:[#allocation6 + $0x70] sm:$0xff]
    %v200 = vld [vmem:[#allocation6 + $0x78] sm:$0xff]
    %v201 = vld [vmem:[#allocation6 + $0x80] sm:$0xff]
    %v202 = vld [vmem:[#allocation6 + $0x88] sm:$0xff]
    %v203 = vld [vmem:[#allocation6 + $0x90] sm:$0xff]
    %v204 = vld [vmem:[#allocation6 + $0x98] sm:$0xff]
    %v205 = vld [vmem:[#allocation6 + $0xa0] sm:$0xff]
    %v206 = vld [vmem:[#allocation6 + $0xa8] sm:$0xff]
    %v207 = vld [vmem:[#allocation6 + $0xb0] sm:$0xff]
    %v208 = vld [vmem:[#allocation6 + $0xb8] sm:$0xff]
    %v209 = vld [vmem:[#allocation6 + $0xc0] sm:$0xff]
    %v210 = vld [vmem:[#allocation6 + $0xc8] sm:$0xff]
    %v211 = vld [vmem:[#allocation6 + $0xd0] sm:$0xff]
    %v212 = vld [vmem:[#allocation6 + $0xd8] sm:$0xff]
    %v213 = vld [vmem:[#allocation6 + $0xe0] sm:$0xff]
    %v214 = vld [vmem:[#allocation6 + $0xe8] sm:$0xff]
    %v215 = vld [vmem:[#allocation6 + $0xf0] sm:$0xff]
    %v216 = vld [vmem:[#allocation6 + $0xf8] sm:$0xff]
    %v217 = vld [vmem:[#allocation6 + $0x100] sm:$0xff]
    %v218 = vld [vmem:[#allocation6 + $0x108] sm:$0xff]
    %v219 = vld [vmem:[#allocation6 + $0x110] sm:$0xff]
    %v220 = vld [vmem:[#allocation6 + $0x118] sm:$0xff]
    %v221 = vld [vmem:[#allocation6 + $0x120] sm:$0xff]
    %v222 = vld [vmem:[#allocation6 + $0x128] sm:$0xff]
    %v223 = vld [vmem:[#allocation6 + $0x130] sm:$0xff]
    %v224 = vld [vmem:[#allocation6 + $0x138] sm:$0xff]
    %v225 = vld [vmem:[#allocation6 + $0x140] sm:$0xff]
    %v226 = vld [vmem:[#allocation6 + $0x148] sm:$0xff]
    %v227 = vld [vmem:[#allocation6 + $0x150] sm:$0xff]
    %v228 = vld [vmem:[#allocation6 + $0x158] sm:$0xff]
    %v229 = vld [vmem:[#allocation6 + $0x160] sm:$0xff]
    %v230 = vld [vmem:[#allocation6 + $0x168] sm:$0xff]
    %v231 = vld [vmem:[#allocation6 + $0x170] sm:$0xff]
    %v232 = vld [vmem:[#allocation6 + $0x178] sm:$0xff]
    %v233 = vld [vmem:[#allocation6 + $0x180] sm:$0xff]
    %v234 = vld [vmem:[#allocation6 + $0x188] sm:$0xff]
    %v235 = vld [vmem:[#allocation6 + $0x190] sm:$0xff]
    %v236 = vld [vmem:[#allocation6 + $0x198] sm:$0xff]
    %v237 = vld [vmem:[#allocation6 + $0x1a0] sm:$0xff]
    %v238 = vld [vmem:[#allocation6 + $0x1a8] sm:$0xff]
    %v239 = vld [vmem:[#allocation6 + $0x1b0] sm:$0xff]
    %v240 = vld [vmem:[#allocation6 + $0x1b8] sm:$0xff]
    %v241 = vld [vmem:[#allocation6 + $0x1c0] sm:$0xff]
    %v242 = vld [vmem:[#allocation6 + $0x1c8] sm:$0xff]
    %v243 = vld [vmem:[#allocation6 + $0x1d0] sm:$0xff]
    %v244 = vld [vmem:[#allocation6 + $0x1d8] sm:$0xff]
    %v245 = vld [vmem:[#allocation6 + $0x1e0] sm:$0xff]
    %v246 = vld [vmem:[#allocation6 + $0x1e8] sm:$0xff]
    %v247 = vld [vmem:[#allocation6 + $0x1f0] sm:$0xff]
    %v248 = vld [vmem:[#allocation6 + $0x1f8] sm:$0xff]
    %v249 = vld [vmem:[#allocation6 + $0x200] sm:$0xff]
    %v250 = vld [vmem:[#allocation6 + $0x208] sm:$0xff]
    %v251 = vld [vmem:[#allocation6 + $0x210] sm:$0xff]
    %v252 = vld [vmem:[#allocation6 + $0x218] sm:$0xff]
    %v253 = vld [vmem:[#allocation6 + $0x220] sm:$0xff]
    %v254 = vld [vmem:[#allocation6 + $0x228] sm:$0xff]
    %v255 = vld [vmem:[#allocation6 + $0x230] sm:$0xff]
    %v256 = vld [vmem:[#allocation6 + $0x238] sm:$0xff]
    %v257 = vld [vmem:[#allocation6 + $0x240] sm:$0xff]
    %v258 = vld [vmem:[#allocation6 + $0x248] sm:$0xff]
    %v259 = vld [vmem:[#allocation6 + $0x250] sm:$0xff]
    %v260 = vld [vmem:[#allocation6 + $0x258] sm:$0xff]
    %v261 = vld [vmem:[#allocation6 + $0x260] sm:$0xff]
    %v262 = vld [vmem:[#allocation6 + $0x268] sm:$0xff]
    %v263 = vld [vmem:[#allocation6 + $0x270] sm:$0xff]
    %v264 = vld [vmem:[#allocation6 + $0x278] sm:$0xff]
    %v265 = vld [vmem:[#allocation6 + $0x280] sm:$0xff]
    %v266 = vld [vmem:[#allocation6 + $0x288] sm:$0xff]
    %v267 = vld [vmem:[#allocation6 + $0x290] sm:$0xff]
    %v268 = vld [vmem:[#allocation6 + $0x298] sm:$0xff]
    %v269 = vld [vmem:[#allocation6 + $0x2a0] sm:$0xff]
    %v270 = vld [vmem:[#allocation6 + $0x2a8] sm:$0xff]
    %v271 = vld [vmem:[#allocation6 + $0x2b0] sm:$0xff]
    %v272 = vld [vmem:[#allocation6 + $0x2b8] sm:$0xff]
    %v273 = vld [vmem:[#allocation6 + $0x2c0] sm:$0xff]
    %v274 = vld [vmem:[#allocation6 + $0x2c8] sm:$0xff]
    %v275 = vld [vmem:[#allocation6 + $0x2d0] sm:$0xff]
    %v276 = vld [vmem:[#allocation6 + $0x2d8] sm:$0xff]
    %v277 = vld [vmem:[#allocation6 + $0x2e0] sm:$0xff]
    %v278 = vld [vmem:[#allocation6 + $0x2e8] sm:$0xff]
    %v279 = vld [vmem:[#allocation6 + $0x2f0] sm:$0xff]
    %v280 = vld [vmem:[#allocation6 + $0x2f8] sm:$0xff]
    %v281 = vld [vmem:[#allocation6 + $0x300] sm:$0xff]
    %v282 = vld [vmem:[#allocation6 + $0x308] sm:$0xff]
    %v283 = vld [vmem:[#allocation6 + $0x310] sm:$0xff]
    %v284 = vld [vmem:[#allocation6 + $0x318] sm:$0xff]
    %v285 = vld [vmem:[#allocation6 + $0x320] sm:$0xff]
    %v286 = vld [vmem:[#allocation6 + $0x328] sm:$0xff]
    %v287 = vld [vmem:[#allocation6 + $0x330] sm:$0xff]
    %v288 = vld [vmem:[#allocation6 + $0x338] sm:$0xff]
    %v289 = vld [vmem:[#allocation6 + $0x340] sm:$0xff]
    %v290 = vld [vmem:[#allocation6 + $0x348] sm:$0xff]
    %v291 = vld [vmem:[#allocation6 + $0x350] sm:$0xff]
    %v292 = vld [vmem:[#allocation6 + $0x358] sm:$0xff]
    %v293 = vld [vmem:[#allocation6 + $0x360] sm:$0xff]
    %v294 = vld [vmem:[#allocation6 + $0x368] sm:$0xff]
    %v295 = vld [vmem:[#allocation6 + $0x370] sm:$0xff]
    %v296 = vld [vmem:[#allocation6 + $0x378] sm:$0xff]
    %v297 = vld [vmem:[#allocation6 + $0x380] sm:$0xff]
    %v298 = vld [vmem:[#allocation6 + $0x388] sm:$0xff]
    %v299 = vld [vmem:[#allocation6 + $0x390] sm:$0xff]
    %v300 = vld [vmem:[#allocation6 + $0x398] sm:$0xff]
    %v301 = vld [vmem:[#allocation6 + $0x3a0] sm:$0xff]
    %v302 = vld [vmem:[#allocation6 + $0x3a8] sm:$0xff]
    %v303 = vld [vmem:[#allocation6 + $0x3b0] sm:$0xff]
    %v304 = vld [vmem:[#allocation6 + $0x3b8] sm:$0xff]
    %v305 = vld [vmem:[#allocation6 + $0x3c0] sm:$0xff]
    %v306 = vld [vmem:[#allocation6 + $0x3c8] sm:$0xff]
    %v307 = vld [vmem:[#allocation6 + $0x3d0] sm:$0xff]
    %v308 = vld [vmem:[#allocation6 + $0x3d8] sm:$0xff]
    %v309 = vld [vmem:[#allocation6 + $0x3e0] sm:$0xff]
    %v310 = vld [vmem:[#allocation6 + $0x3e8] sm:$0xff]
    %v311 = vld [vmem:[#allocation6 + $0x3f0] sm:$0xff]
    %v312 = vld [vmem:[#allocation6 + $0x3f8] sm:$0xff]
    %v313 = vld [vmem:[%s2] sm:$0x1]
    %v315 = vlaneseq
    %v316 = vshrl.u32 %v315, 7
    %v317 = vsub.s32 0, %v316
    %v318 = vrot.slane %v313, %v317
    %320 = vmatprep.subr.mxu0 0.0
    %321 = vmatpush1.msra.mxu0 %v200
    %322 = vmatprep.subr.mxu0 0.0
    %323 = vmatpush1.msra.mxu0 %v199
    %324 = vmatprep.subr.mxu0 0.0
    %325 = vmatpush1.msra.mxu0 %v198
    %326 = vmatprep.subr.mxu0 0.0
    %327 = vmatpush1.msra.mxu0 %v197
    %328 = vmatprep.subr.mxu0 0.0
    %329 = vmatpush1.msra.mxu0 %v196
    %330 = vmatprep.subr.mxu0 0.0
    %331 = vmatpush1.msra.mxu0 %v195
    %332 = vmatprep.subr.mxu0 0.0
    %333 = vmatpush1.msra.mxu0 %v194
    %334 = vmatprep.subr.mxu0 0.0
    %335 = vmatpush1.msra.mxu0 %v193
    %336 = vmatprep.subr.mxu0 0.0
    %337 = vmatpush1.msra.mxu0 %v192
    %338 = vmatprep.subr.mxu0 0.0
    %339 = vmatpush1.msra.mxu0 %v191
    %340 = vmatprep.subr.mxu0 0.0
    %341 = vmatpush1.msra.mxu0 %v190
    %342 = vmatprep.subr.mxu0 0.0
    %343 = vmatpush1.msra.mxu0 %v189
    %344 = vmatprep.subr.mxu0 0.0
    %345 = vmatpush1.msra.mxu0 %v188
    %346 = vmatprep.subr.mxu0 0.0
    %347 = vmatpush1.msra.mxu0 %v187
    %348 = vmatprep.subr.mxu0 0.0
    %349 = vmatpush1.msra.mxu0 %v186
    %350 = vmatprep.subr.mxu0 0.0
    %351 = vmatpush1.msra.mxu0 %v185
    %352 = vmatprep.subr.mxu0 0.0
    %353 = vmatpush2.msra.mxu0 %v216
    %354 = vmatprep.subr.mxu0 0.0
    %355 = vmatpush2.msra.mxu0 %v215
    %356 = vmatprep.subr.mxu0 0.0
    %357 = vmatpush2.msra.mxu0 %v214
    %358 = vmatprep.subr.mxu0 0.0
    %359 = vmatpush2.msra.mxu0 %v213
    %360 = vmatprep.subr.mxu0 0.0
    %361 = vmatpush2.msra.mxu0 %v212
    %362 = vmatprep.subr.mxu0 0.0
    %363 = vmatpush2.msra.mxu0 %v211
    %364 = vmatprep.subr.mxu0 0.0
    %365 = vmatpush2.msra.mxu0 %v210
    %366 = vmatprep.subr.mxu0 0.0
    %367 = vmatpush2.msra.mxu0 %v209
    %368 = vmatprep.subr.mxu0 0.0
    %369 = vmatpush2.msra.mxu0 %v208
    %370 = vmatprep.subr.mxu0 0.0
    %371 = vmatpush2.msra.mxu0 %v207
    %372 = vmatprep.subr.mxu0 0.0
    %373 = vmatpush2.msra.mxu0 %v206
    %374 = vmatprep.subr.mxu0 0.0
    %375 = vmatpush2.msra.mxu0 %v205
    %376 = vmatprep.subr.mxu0 0.0
    %377 = vmatpush2.msra.mxu0 %v204
    %378 = vmatprep.subr.mxu0 0.0
    %379 = vmatpush2.msra.mxu0 %v203
    %380 = vmatprep.subr.mxu0 0.0
    %381 = vmatpush2.msra.mxu0 %v202
    %382 = vmatprep.subr.mxu0 0.0
    %383 = vmatpush2.msra.mxu0 %v201
    %384 = vmatprep.mubr.f32.mxu0 %v58
    %385 = vmatmul.mubr.f32.gmra.mxu0 %v57
    %v386 = vpop.f32.mrf.mxu0
    %v387 = vadd.f32 %v318, %v386
    %v388 = vpop.f32.mrf.mxu0
    %389 = vmatprep.mubr.f32.mxu0 %v66
    %390 = vmatmul.mubr.f32.gmra.mxu0 %v65
    %v391 = vpop.f32.mrf.mxu0
    %v392 = vadd.f32 %v318, %v391
    %v393 = vpop.f32.mrf.mxu0
    %394 = vmatprep.mubr.f32.mxu0 %v74
    %395 = vmatmul.mubr.f32.gmra.mxu0 %v73
    %v396 = vpop.f32.mrf.mxu0
    %v397 = vadd.f32 %v318, %v396
    %v398 = vpop.f32.mrf.mxu0
    %399 = vmatprep.mubr.f32.mxu0 %v82
    %400 = vmatmul.mubr.f32.gmra.mxu0 %v81
    %v401 = vpop.f32.mrf.mxu0
    %v402 = vadd.f32 %v318, %v401
    %v403 = vpop.f32.mrf.mxu0
    %404 = vmatprep.mubr.f32.mxu0 %v90
    %405 = vmatmul.mubr.f32.gmra.mxu0 %v89
    %v406 = vpop.f32.mrf.mxu0
    %v407 = vadd.f32 %v318, %v406
    %v408 = vpop.f32.mrf.mxu0
    %409 = vmatprep.mubr.f32.mxu0 %v98
    %410 = vmatmul.mubr.f32.gmra.mxu0 %v97
    %v411 = vpop.f32.mrf.mxu0
    %v412 = vadd.f32 %v318, %v411
    %v413 = vpop.f32.mrf.mxu0
    %414 = vmatprep.mubr.f32.mxu0 %v106
    %415 = vmatmul.mubr.f32.gmra.mxu0 %v105
    %v416 = vpop.f32.mrf.mxu0
    %v417 = vadd.f32 %v318, %v416
    %v418 = vpop.f32.mrf.mxu0
    %419 = vmatprep.mubr.f32.mxu0 %v114
    %420 = vmatmul.mubr.f32.gmra.mxu0 %v113
    %v421 = vpop.f32.mrf.mxu0
    %v422 = vadd.f32 %v318, %v421
    %v423 = vpop.f32.mrf.mxu0
    %424 = vmatprep.mubr.f32.mxu0 %v122
    %425 = vmatmul.mubr.f32.gmra.mxu0 %v121
    %v426 = vpop.f32.mrf.mxu0
    %v427 = vadd.f32 %v318, %v426
    %v428 = vpop.f32.mrf.mxu0
    %429 = vmatprep.mubr.f32.mxu0 %v130
    %430 = vmatmul.mubr.f32.gmra.mxu0 %v129
    %v431 = vpop.f32.mrf.mxu0
    %v432 = vadd.f32 %v318, %v431
    %v433 = vpop.f32.mrf.mxu0
    %434 = vmatprep.mubr.f32.mxu0 %v138
    %435 = vmatmul.mubr.f32.gmra.mxu0 %v137
    %v436 = vpop.f32.mrf.mxu0
    %v437 = vadd.f32 %v318, %v436
    %v438 = vpop.f32.mrf.mxu0
    %439 = vmatprep.mubr.f32.mxu0 %v146
    %440 = vmatmul.mubr.f32.gmra.mxu0 %v145
    %v441 = vpop.f32.mrf.mxu0
    %v442 = vadd.f32 %v318, %v441
    %v443 = vpop.f32.mrf.mxu0
    %444 = vmatprep.mubr.f32.mxu0 %v154
    %445 = vmatmul.mubr.f32.gmra.mxu0 %v153
    %v446 = vpop.f32.mrf.mxu0
    %v447 = vadd.f32 %v318, %v446
    %v448 = vpop.f32.mrf.mxu0
    %449 = vmatprep.mubr.f32.mxu0 %v162
    %450 = vmatmul.mubr.f32.gmra.mxu0 %v161
    %v451 = vpop.f32.mrf.mxu0
    %v452 = vadd.f32 %v318, %v451
    %v453 = vpop.f32.mrf.mxu0
    %454 = vmatprep.mubr.f32.mxu0 %v170
    %455 = vmatmul.mubr.f32.gmra.mxu0 %v169
    %v456 = vpop.f32.mrf.mxu0
    %v457 = vadd.f32 %v318, %v456
    %v458 = vpop.f32.mrf.mxu0
    %459 = vmatprep.mubr.f32.mxu0 %v178
    %460 = vmatmul.mubr.f32.gmra.mxu0 %v177
    %v461 = vpop.f32.mrf.mxu0
    %v462 = vadd.f32 %v318, %v461
    %v463 = vpop.f32.mrf.mxu0
    %464 = vdwg.mxu0
    %465 = vmatprep.subr.mxu0 0.0
    %466 = vmatpush1.msra.mxu0 %v232
    %467 = vmatprep.subr.mxu0 0.0
    %468 = vmatpush1.msra.mxu0 %v231
    %469 = vmatprep.subr.mxu0 0.0
    %470 = vmatpush1.msra.mxu0 %v230
    %471 = vmatprep.subr.mxu0 0.0
    %472 = vmatpush1.msra.mxu0 %v229
    %473 = vmatprep.subr.mxu0 0.0
    %474 = vmatpush1.msra.mxu0 %v228
    %475 = vmatprep.subr.mxu0 0.0
    %476 = vmatpush1.msra.mxu0 %v227
    %477 = vmatprep.subr.mxu0 0.0
    %478 = vmatpush1.msra.mxu0 %v226
    %479 = vmatprep.subr.mxu0 0.0
    %480 = vmatpush1.msra.mxu0 %v225
    %481 = vmatprep.subr.mxu0 0.0
    %482 = vmatpush1.msra.mxu0 %v224
    %483 = vmatprep.subr.mxu0 0.0
    %484 = vmatpush1.msra.mxu0 %v223
    %485 = vmatprep.subr.mxu0 0.0
    %486 = vmatpush1.msra.mxu0 %v222
    %487 = vmatprep.subr.mxu0 0.0
    %488 = vmatpush1.msra.mxu0 %v221
    %489 = vmatprep.subr.mxu0 0.0
    %490 = vmatpush1.msra.mxu0 %v220
    %491 = vmatprep.subr.mxu0 0.0
    %492 = vmatpush1.msra.mxu0 %v219
    %493 = vmatprep.subr.mxu0 0.0
    %494 = vmatpush1.msra.mxu0 %v218
    %495 = vmatprep.subr.mxu0 0.0
    %496 = vmatpush1.msra.mxu0 %v217
    %497 = vmatprep.subr.mxu0 0.0
    %498 = vmatpush2.msra.mxu0 %v248
    %499 = vmatprep.subr.mxu0 0.0
    %500 = vmatpush2.msra.mxu0 %v247
    %501 = vmatprep.subr.mxu0 0.0
    %502 = vmatpush2.msra.mxu0 %v246
    %503 = vmatprep.subr.mxu0 0.0
    %504 = vmatpush2.msra.mxu0 %v245
    %505 = vmatprep.subr.mxu0 0.0
    %506 = vmatpush2.msra.mxu0 %v244
    %507 = vmatprep.subr.mxu0 0.0
    %508 = vmatpush2.msra.mxu0 %v243
    %509 = vmatprep.subr.mxu0 0.0
    %510 = vmatpush2.msra.mxu0 %v242
    %511 = vmatprep.subr.mxu0 0.0
    %512 = vmatpush2.msra.mxu0 %v241
    %513 = vmatprep.subr.mxu0 0.0
    %514 = vmatpush2.msra.mxu0 %v240
    %515 = vmatprep.subr.mxu0 0.0
    %516 = vmatpush2.msra.mxu0 %v239
    %517 = vmatprep.subr.mxu0 0.0
    %518 = vmatpush2.msra.mxu0 %v238
    %519 = vmatprep.subr.mxu0 0.0
    %520 = vmatpush2.msra.mxu0 %v237
    %521 = vmatprep.subr.mxu0 0.0
    %522 = vmatpush2.msra.mxu0 %v236
    %523 = vmatprep.subr.mxu0 0.0
    %524 = vmatpush2.msra.mxu0 %v235
    %525 = vmatprep.subr.mxu0 0.0
    %526 = vmatpush2.msra.mxu0 %v234
    %527 = vmatprep.subr.mxu0 0.0
    %528 = vmatpush2.msra.mxu0 %v233
    %529 = vmatprep.mubr.f32.mxu0 %v60
    %530 = vmatmul.mubr.f32.gmra.mxu0 %v59
    %v531 = vpop.f32.mrf.mxu0
    %v532 = vadd.f32 %v387, %v531
    %v533 = vpop.f32.mrf.mxu0
    %534 = vmatprep.mubr.f32.mxu0 %v68
    %535 = vmatmul.mubr.f32.gmra.mxu0 %v67
    %v536 = vpop.f32.mrf.mxu0
    %v537 = vadd.f32 %v392, %v536
    %v538 = vpop.f32.mrf.mxu0
    %539 = vmatprep.mubr.f32.mxu0 %v76
    %540 = vmatmul.mubr.f32.gmra.mxu0 %v75
    %v541 = vpop.f32.mrf.mxu0
    %v542 = vadd.f32 %v397, %v541
    %v543 = vpop.f32.mrf.mxu0
    %544 = vmatprep.mubr.f32.mxu0 %v84
    %545 = vmatmul.mubr.f32.gmra.mxu0 %v83
    %v546 = vpop.f32.mrf.mxu0
    %v547 = vadd.f32 %v402, %v546
    %v548 = vpop.f32.mrf.mxu0
    %549 = vmatprep.mubr.f32.mxu0 %v92
    %550 = vmatmul.mubr.f32.gmra.mxu0 %v91
    %v551 = vpop.f32.mrf.mxu0
    %v552 = vadd.f32 %v407, %v551
    %v553 = vpop.f32.mrf.mxu0
    %554 = vmatprep.mubr.f32.mxu0 %v100
    %555 = vmatmul.mubr.f32.gmra.mxu0 %v99
    %v556 = vpop.f32.mrf.mxu0
    %v557 = vadd.f32 %v412, %v556
    %v558 = vpop.f32.mrf.mxu0
    %559 = vmatprep.mubr.f32.mxu0 %v108
    %560 = vmatmul.mubr.f32.gmra.mxu0 %v107
    %v561 = vpop.f32.mrf.mxu0
    %v562 = vadd.f32 %v417, %v561
    %v563 = vpop.f32.mrf.mxu0
    %564 = vmatprep.mubr.f32.mxu0 %v116
    %565 = vmatmul.mubr.f32.gmra.mxu0 %v115
    %v566 = vpop.f32.mrf.mxu0
    %v567 = vadd.f32 %v422, %v566
    %v568 = vpop.f32.mrf.mxu0
    %569 = vmatprep.mubr.f32.mxu0 %v124
    %570 = vmatmul.mubr.f32.gmra.mxu0 %v123
    %v571 = vpop.f32.mrf.mxu0
    %v572 = vadd.f32 %v427, %v571
    %v573 = vpop.f32.mrf.mxu0
    %574 = vmatprep.mubr.f32.mxu0 %v132
    %575 = vmatmul.mubr.f32.gmra.mxu0 %v131
    %v576 = vpop.f32.mrf.mxu0
    %v577 = vadd.f32 %v432, %v576
    %v578 = vpop.f32.mrf.mxu0
    %579 = vmatprep.mubr.f32.mxu0 %v140
    %580 = vmatmul.mubr.f32.gmra.mxu0 %v139
    %v581 = vpop.f32.mrf.mxu0
    %v582 = vadd.f32 %v437, %v581
    %v583 = vpop.f32.mrf.mxu0
    %584 = vmatprep.mubr.f32.mxu0 %v148
    %585 = vmatmul.mubr.f32.gmra.mxu0 %v147
    %v586 = vpop.f32.mrf.mxu0
    %v587 = vadd.f32 %v442, %v586
    %v588 = vpop.f32.mrf.mxu0
    %589 = vmatprep.mubr.f32.mxu0 %v156
    %590 = vmatmul.mubr.f32.gmra.mxu0 %v155
    %v591 = vpop.f32.mrf.mxu0
    %v592 = vadd.f32 %v447, %v591
    %v593 = vpop.f32.mrf.mxu0
    %594 = vmatprep.mubr.f32.mxu0 %v164
    %595 = vmatmul.mubr.f32.gmra.mxu0 %v163
    %v596 = vpop.f32.mrf.mxu0
    %v597 = vadd.f32 %v452, %v596
    %v598 = vpop.f32.mrf.mxu0
    %599 = vmatprep.mubr.f32.mxu0 %v172
    %600 = vmatmul.mubr.f32.gmra.mxu0 %v171
    %v601 = vpop.f32.mrf.mxu0
    %v602 = vadd.f32 %v457, %v601
    %v603 = vpop.f32.mrf.mxu0
    %604 = vmatprep.mubr.f32.mxu0 %v180
    %605 = vmatmul.mubr.f32.gmra.mxu0 %v179
    %v606 = vpop.f32.mrf.mxu0
    %v607 = vadd.f32 %v462, %v606
    %v608 = vpop.f32.mrf.mxu0
    %609 = vdwg.mxu0
    %610 = vmatprep.subr.mxu0 0.0
    %611 = vmatpush1.msra.mxu0 %v264
    %612 = vmatprep.subr.mxu0 0.0
    %613 = vmatpush1.msra.mxu0 %v263
    %614 = vmatprep.subr.mxu0 0.0
    %615 = vmatpush1.msra.mxu0 %v262
    %616 = vmatprep.subr.mxu0 0.0
    %617 = vmatpush1.msra.mxu0 %v261
    %618 = vmatprep.subr.mxu0 0.0
    %619 = vmatpush1.msra.mxu0 %v260
    %620 = vmatprep.subr.mxu0 0.0
    %621 = vmatpush1.msra.mxu0 %v259
    %622 = vmatprep.subr.mxu0 0.0
    %623 = vmatpush1.msra.mxu0 %v258
    %624 = vmatprep.subr.mxu0 0.0
    %625 = vmatpush1.msra.mxu0 %v257
    %626 = vmatprep.subr.mxu0 0.0
    %627 = vmatpush1.msra.mxu0 %v256
    %628 = vmatprep.subr.mxu0 0.0
    %629 = vmatpush1.msra.mxu0 %v255
    %630 = vmatprep.subr.mxu0 0.0
    %631 = vmatpush1.msra.mxu0 %v254
    %632 = vmatprep.subr.mxu0 0.0
    %633 = vmatpush1.msra.mxu0 %v253
    %634 = vmatprep.subr.mxu0 0.0
    %635 = vmatpush1.msra.mxu0 %v252
    %636 = vmatprep.subr.mxu0 0.0
    %637 = vmatpush1.msra.mxu0 %v251
    %638 = vmatprep.subr.mxu0 0.0
    %639 = vmatpush1.msra.mxu0 %v250
    %640 = vmatprep.subr.mxu0 0.0
    %641 = vmatpush1.msra.mxu0 %v249
    %642 = vmatprep.subr.mxu0 0.0
    %643 = vmatpush2.msra.mxu0 %v280
    %644 = vmatprep.subr.mxu0 0.0
    %645 = vmatpush2.msra.mxu0 %v279
    %646 = vmatprep.subr.mxu0 0.0
    %647 = vmatpush2.msra.mxu0 %v278
    %648 = vmatprep.subr.mxu0 0.0
    %649 = vmatpush2.msra.mxu0 %v277
    %650 = vmatprep.subr.mxu0 0.0
    %651 = vmatpush2.msra.mxu0 %v276
    %652 = vmatprep.subr.mxu0 0.0
    %653 = vmatpush2.msra.mxu0 %v275
    %654 = vmatprep.subr.mxu0 0.0
    %655 = vmatpush2.msra.mxu0 %v274
    %656 = vmatprep.subr.mxu0 0.0
    %657 = vmatpush2.msra.mxu0 %v273
    %658 = vmatprep.subr.mxu0 0.0
    %659 = vmatpush2.msra.mxu0 %v272
    %660 = vmatprep.subr.mxu0 0.0
    %661 = vmatpush2.msra.mxu0 %v271
    %662 = vmatprep.subr.mxu0 0.0
    %663 = vmatpush2.msra.mxu0 %v270
    %664 = vmatprep.subr.mxu0 0.0
    %665 = vmatpush2.msra.mxu0 %v269
    %666 = vmatprep.subr.mxu0 0.0
    %667 = vmatpush2.msra.mxu0 %v268
    %668 = vmatprep.subr.mxu0 0.0
    %669 = vmatpush2.msra.mxu0 %v267
    %670 = vmatprep.subr.mxu0 0.0
    %671 = vmatpush2.msra.mxu0 %v266
    %672 = vmatprep.subr.mxu0 0.0
    %673 = vmatpush2.msra.mxu0 %v265
    %674 = vmatprep.mubr.f32.mxu0 %v62
    %675 = vmatmul.mubr.f32.gmra.mxu0 %v61
    %v676 = vpop.f32.mrf.mxu0
    %v677 = vadd.f32 %v532, %v676
    %v678 = vpop.f32.mrf.mxu0
    %679 = vmatprep.mubr.f32.mxu0 %v70
    %680 = vmatmul.mubr.f32.gmra.mxu0 %v69
    %v681 = vpop.f32.mrf.mxu0
    %v682 = vadd.f32 %v537, %v681
    %v683 = vpop.f32.mrf.mxu0
    %684 = vmatprep.mubr.f32.mxu0 %v78
    %685 = vmatmul.mubr.f32.gmra.mxu0 %v77
    %v686 = vpop.f32.mrf.mxu0
    %v687 = vadd.f32 %v542, %v686
    %v688 = vpop.f32.mrf.mxu0
    %689 = vmatprep.mubr.f32.mxu0 %v86
    %690 = vmatmul.mubr.f32.gmra.mxu0 %v85
    %v691 = vpop.f32.mrf.mxu0
    %v692 = vadd.f32 %v547, %v691
    %v693 = vpop.f32.mrf.mxu0
    %694 = vmatprep.mubr.f32.mxu0 %v94
    %695 = vmatmul.mubr.f32.gmra.mxu0 %v93
    %v696 = vpop.f32.mrf.mxu0
    %v697 = vadd.f32 %v552, %v696
    %v698 = vpop.f32.mrf.mxu0
    %699 = vmatprep.mubr.f32.mxu0 %v102
    %700 = vmatmul.mubr.f32.gmra.mxu0 %v101
    %v701 = vpop.f32.mrf.mxu0
    %v702 = vadd.f32 %v557, %v701
    %v703 = vpop.f32.mrf.mxu0
    %704 = vmatprep.mubr.f32.mxu0 %v110
    %705 = vmatmul.mubr.f32.gmra.mxu0 %v109
    %v706 = vpop.f32.mrf.mxu0
    %v707 = vadd.f32 %v562, %v706
    %v708 = vpop.f32.mrf.mxu0
    %709 = vmatprep.mubr.f32.mxu0 %v118
    %710 = vmatmul.mubr.f32.gmra.mxu0 %v117
    %v711 = vpop.f32.mrf.mxu0
    %v712 = vadd.f32 %v567, %v711
    %v713 = vpop.f32.mrf.mxu0
    %714 = vmatprep.mubr.f32.mxu0 %v126
    %715 = vmatmul.mubr.f32.gmra.mxu0 %v125
    %v716 = vpop.f32.mrf.mxu0
    %v717 = vadd.f32 %v572, %v716
    %v718 = vpop.f32.mrf.mxu0
    %719 = vmatprep.mubr.f32.mxu0 %v134
    %720 = vmatmul.mubr.f32.gmra.mxu0 %v133
    %v721 = vpop.f32.mrf.mxu0
    %v722 = vadd.f32 %v577, %v721
    %v723 = vpop.f32.mrf.mxu0
    %724 = vmatprep.mubr.f32.mxu0 %v142
    %725 = vmatmul.mubr.f32.gmra.mxu0 %v141
    %v726 = vpop.f32.mrf.mxu0
    %v727 = vadd.f32 %v582, %v726
    %v728 = vpop.f32.mrf.mxu0
    %729 = vmatprep.mubr.f32.mxu0 %v150
    %730 = vmatmul.mubr.f32.gmra.mxu0 %v149
    %v731 = vpop.f32.mrf.mxu0
    %v732 = vadd.f32 %v587, %v731
    %v733 = vpop.f32.mrf.mxu0
    %734 = vmatprep.mubr.f32.mxu0 %v158
    %735 = vmatmul.mubr.f32.gmra.mxu0 %v157
    %v736 = vpop.f32.mrf.mxu0
    %v737 = vadd.f32 %v592, %v736
    %v738 = vpop.f32.mrf.mxu0
    %739 = vmatprep.mubr.f32.mxu0 %v166
    %740 = vmatmul.mubr.f32.gmra.mxu0 %v165
    %v741 = vpop.f32.mrf.mxu0
    %v742 = vadd.f32 %v597, %v741
    %v743 = vpop.f32.mrf.mxu0
    %744 = vmatprep.mubr.f32.mxu0 %v174
    %745 = vmatmul.mubr.f32.gmra.mxu0 %v173
    %v746 = vpop.f32.mrf.mxu0
    %v747 = vadd.f32 %v602, %v746
    %v748 = vpop.f32.mrf.mxu0
    %749 = vmatprep.mubr.f32.mxu0 %v182
    %750 = vmatmul.mubr.f32.gmra.mxu0 %v181
    %v751 = vpop.f32.mrf.mxu0
    %v752 = vadd.f32 %v607, %v751
    %v753 = vpop.f32.mrf.mxu0
    %754 = vdwg.mxu0
    %755 = vmatprep.subr.mxu0 0.0
    %756 = vmatpush1.msra.mxu0 %v296
    %757 = vmatprep.subr.mxu0 0.0
    %758 = vmatpush1.msra.mxu0 %v295
    %759 = vmatprep.subr.mxu0 0.0
    %760 = vmatpush1.msra.mxu0 %v294
    %761 = vmatprep.subr.mxu0 0.0
    %762 = vmatpush1.msra.mxu0 %v293
    %763 = vmatprep.subr.mxu0 0.0
    %764 = vmatpush1.msra.mxu0 %v292
    %765 = vmatprep.subr.mxu0 0.0
    %766 = vmatpush1.msra.mxu0 %v291
    %767 = vmatprep.subr.mxu0 0.0
    %768 = vmatpush1.msra.mxu0 %v290
    %769 = vmatprep.subr.mxu0 0.0
    %770 = vmatpush1.msra.mxu0 %v289
    %771 = vmatprep.subr.mxu0 0.0
    %772 = vmatpush1.msra.mxu0 %v288
    %773 = vmatprep.subr.mxu0 0.0
    %774 = vmatpush1.msra.mxu0 %v287
    %775 = vmatprep.subr.mxu0 0.0
    %776 = vmatpush1.msra.mxu0 %v286
    %777 = vmatprep.subr.mxu0 0.0
    %778 = vmatpush1.msra.mxu0 %v285
    %779 = vmatprep.subr.mxu0 0.0
    %780 = vmatpush1.msra.mxu0 %v284
    %781 = vmatprep.subr.mxu0 0.0
    %782 = vmatpush1.msra.mxu0 %v283
    %783 = vmatprep.subr.mxu0 0.0
    %784 = vmatpush1.msra.mxu0 %v282
    %785 = vmatprep.subr.mxu0 0.0
    %786 = vmatpush1.msra.mxu0 %v281
    %787 = vmatprep.subr.mxu0 0.0
    %788 = vmatpush2.msra.mxu0 %v312
    %789 = vmatprep.subr.mxu0 0.0
    %790 = vmatpush2.msra.mxu0 %v311
    %791 = vmatprep.subr.mxu0 0.0
    %792 = vmatpush2.msra.mxu0 %v310
    %793 = vmatprep.subr.mxu0 0.0
    %794 = vmatpush2.msra.mxu0 %v309
    %795 = vmatprep.subr.mxu0 0.0
    %796 = vmatpush2.msra.mxu0 %v308
    %797 = vmatprep.subr.mxu0 0.0
    %798 = vmatpush2.msra.mxu0 %v307
    %799 = vmatprep.subr.mxu0 0.0
    %800 = vmatpush2.msra.mxu0 %v306
    %801 = vmatprep.subr.mxu0 0.0
    %802 = vmatpush2.msra.mxu0 %v305
    %803 = vmatprep.subr.mxu0 0.0
    %804 = vmatpush2.msra.mxu0 %v304
    %805 = vmatprep.subr.mxu0 0.0
    %806 = vmatpush2.msra.mxu0 %v303
    %807 = vmatprep.subr.mxu0 0.0
    %808 = vmatpush2.msra.mxu0 %v302
    %809 = vmatprep.subr.mxu0 0.0
    %810 = vmatpush2.msra.mxu0 %v301
    %811 = vmatprep.subr.mxu0 0.0
    %812 = vmatpush2.msra.mxu0 %v300
    %813 = vmatprep.subr.mxu0 0.0
    %814 = vmatpush2.msra.mxu0 %v299
    %815 = vmatprep.subr.mxu0 0.0
    %816 = vmatpush2.msra.mxu0 %v298
    %817 = vmatprep.subr.mxu0 0.0
    %818 = vmatpush2.msra.mxu0 %v297
    %819 = vmatprep.mubr.f32.mxu0 %v64
    %820 = vmatmul.mubr.f32.gmra.mxu0 %v63
    %v821 = vpop.f32.mrf.mxu0
    %v822 = vadd.f32 %v677, %v821
    %v823 = vpop.f32.mrf.mxu0
    %824 = vmatprep.mubr.f32.mxu0 %v72
    %825 = vmatmul.mubr.f32.gmra.mxu0 %v71
    %v826 = vpop.f32.mrf.mxu0
    %v827 = vadd.f32 %v682, %v826
    %v828 = vpop.f32.mrf.mxu0
    %829 = vmatprep.mubr.f32.mxu0 %v80
    %830 = vmatmul.mubr.f32.gmra.mxu0 %v79
    %v831 = vpop.f32.mrf.mxu0
    %v832 = vadd.f32 %v687, %v831
    %v833 = vpop.f32.mrf.mxu0
    %834 = vmatprep.mubr.f32.mxu0 %v88
    %835 = vmatmul.mubr.f32.gmra.mxu0 %v87
    %v836 = vpop.f32.mrf.mxu0
    %v837 = vadd.f32 %v692, %v836
    %v838 = vpop.f32.mrf.mxu0
    %839 = vmatprep.mubr.f32.mxu0 %v96
    %840 = vmatmul.mubr.f32.gmra.mxu0 %v95
    %v841 = vpop.f32.mrf.mxu0
    %v842 = vadd.f32 %v697, %v841
    %v843 = vpop.f32.mrf.mxu0
    %844 = vmatprep.mubr.f32.mxu0 %v104
    %845 = vmatmul.mubr.f32.gmra.mxu0 %v103
    %v846 = vpop.f32.mrf.mxu0
    %v847 = vadd.f32 %v702, %v846
    %v848 = vpop.f32.mrf.mxu0
    %849 = vmatprep.mubr.f32.mxu0 %v112
    %850 = vmatmul.mubr.f32.gmra.mxu0 %v111
    %v851 = vpop.f32.mrf.mxu0
    %v852 = vadd.f32 %v707, %v851
    %v853 = vpop.f32.mrf.mxu0
    %854 = vmatprep.mubr.f32.mxu0 %v120
    %855 = vmatmul.mubr.f32.gmra.mxu0 %v119
    %v856 = vpop.f32.mrf.mxu0
    %v857 = vadd.f32 %v712, %v856
    %v858 = vpop.f32.mrf.mxu0
    %859 = vmatprep.mubr.f32.mxu0 %v128
    %860 = vmatmul.mubr.f32.gmra.mxu0 %v127
    %v861 = vpop.f32.mrf.mxu0
    %v862 = vadd.f32 %v717, %v861
    %v863 = vpop.f32.mrf.mxu0
    %864 = vmatprep.mubr.f32.mxu0 %v136
    %865 = vmatmul.mubr.f32.gmra.mxu0 %v135
    %v866 = vpop.f32.mrf.mxu0
    %v867 = vadd.f32 %v722, %v866
    %v868 = vpop.f32.mrf.mxu0
    %869 = vmatprep.mubr.f32.mxu0 %v144
    %870 = vmatmul.mubr.f32.gmra.mxu0 %v143
    %v871 = vpop.f32.mrf.mxu0
    %v872 = vadd.f32 %v727, %v871
    %v873 = vpop.f32.mrf.mxu0
    %874 = vmatprep.mubr.f32.mxu0 %v152
    %875 = vmatmul.mubr.f32.gmra.mxu0 %v151
    %v876 = vpop.f32.mrf.mxu0
    %v877 = vadd.f32 %v732, %v876
    %v878 = vpop.f32.mrf.mxu0
    %879 = vmatprep.mubr.f32.mxu0 %v160
    %880 = vmatmul.mubr.f32.gmra.mxu0 %v159
    %v881 = vpop.f32.mrf.mxu0
    %v882 = vadd.f32 %v737, %v881
    %v883 = vpop.f32.mrf.mxu0
    %884 = vmatprep.mubr.f32.mxu0 %v168
    %885 = vmatmul.mubr.f32.gmra.mxu0 %v167
    %v886 = vpop.f32.mrf.mxu0
    %v887 = vadd.f32 %v742, %v886
    %v888 = vpop.f32.mrf.mxu0
    %889 = vmatprep.mubr.f32.mxu0 %v176
    %890 = vmatmul.mubr.f32.gmra.mxu0 %v175
    %v891 = vpop.f32.mrf.mxu0
    %v892 = vadd.f32 %v747, %v891
    %v893 = vpop.f32.mrf.mxu0
    %894 = vmatprep.mubr.f32.mxu0 %v184
    %895 = vmatmul.mubr.f32.gmra.mxu0 %v183
    %v896 = vpop.f32.mrf.mxu0
    %v897 = vadd.f32 %v752, %v896
    %v898 = vpop.f32.mrf.mxu0
    %899 = vdwg.mxu0
    %v900 = vmax.f32 %v822, 0.0
    %v901 = vmax.f32 %v827, 0.0
    %v902 = vmax.f32 %v832, 0.0
    %v903 = vmax.f32 %v837, 0.0
    %v904 = vmax.f32 %v842, 0.0
    %v905 = vmax.f32 %v847, 0.0
    %v906 = vmax.f32 %v852, 0.0
    %v907 = vmax.f32 %v857, 0.0
    %v908 = vmax.f32 %v862, 0.0
    %v909 = vmax.f32 %v867, 0.0
    %v910 = vmax.f32 %v872, 0.0
    %v911 = vmax.f32 %v877, 0.0
    %v912 = vmax.f32 %v882, 0.0
    %v913 = vmax.f32 %v887, 0.0
    %v914 = vmax.f32 %v892, 0.0
    %v915 = vmax.f32 %v897, 0.0
    %v916 = vld [vmem:[%s3] sm:$0xff]
    %v917 = vld [vmem:[%s3 + $0x8] sm:$0xff]
    %v918 = vld [vmem:[%s3 + $0x10] sm:$0xff]
    %v919 = vld [vmem:[%s3 + $0x18] sm:$0xff]
    %v920 = vld [vmem:[%s3 + $0x20] sm:$0xff]
    %v921 = vld [vmem:[%s3 + $0x28] sm:$0xff]
    %v922 = vld [vmem:[%s3 + $0x30] sm:$0xff]
    %v923 = vld [vmem:[%s3 + $0x38] sm:$0xff]
    %v924 = vld [vmem:[%s3 + $0x40] sm:$0xff]
    %v925 = vld [vmem:[%s3 + $0x48] sm:$0xff]
    %v926 = vld [vmem:[%s3 + $0x50] sm:$0xff]
    %v927 = vld [vmem:[%s3 + $0x58] sm:$0xff]
    %v928 = vld [vmem:[%s3 + $0x60] sm:$0xff]
    %v929 = vld [vmem:[%s3 + $0x68] sm:$0xff]
    %v930 = vld [vmem:[%s3 + $0x70] sm:$0xff]
    %v931 = vld [vmem:[%s3 + $0x78] sm:$0xff]
    %v932 = vld [vmem:[%s4] sm:$0x1]
    %v934 = vlaneseq
    %v935 = vshrl.u32 %v934, 7
    %v936 = vsub.s32 0, %v935
    %v937 = vrot.slane %v932, %v936
    %939 = vmatprep.subr.mxu0 0.0
    %940 = vmatpush1.msra.mxu0 %v931
    %941 = vmatprep.subr.mxu0 0.0
    %942 = vmatpush1.msra.mxu0 %v930
    %943 = vmatprep.subr.mxu0 0.0
    %944 = vmatpush1.msra.mxu0 %v929
    %945 = vmatprep.subr.mxu0 0.0
    %946 = vmatpush1.msra.mxu0 %v928
    %947 = vmatprep.subr.mxu0 0.0
    %948 = vmatpush1.msra.mxu0 %v927
    %949 = vmatprep.subr.mxu0 0.0
    %950 = vmatpush1.msra.mxu0 %v926
    %951 = vmatprep.subr.mxu0 0.0
    %952 = vmatpush1.msra.mxu0 %v925
    %953 = vmatprep.subr.mxu0 0.0
    %954 = vmatpush1.msra.mxu0 %v924
    %955 = vmatprep.subr.mxu0 0.0
    %956 = vmatpush1.msra.mxu0 %v923
    %957 = vmatprep.subr.mxu0 0.0
    %958 = vmatpush1.msra.mxu0 %v922
    %959 = vmatprep.subr.mxu0 0.0
    %960 = vmatpush1.msra.mxu0 %v921
    %961 = vmatprep.subr.mxu0 0.0
    %962 = vmatpush1.msra.mxu0 %v920
    %963 = vmatprep.subr.mxu0 0.0
    %964 = vmatpush1.msra.mxu0 %v919
    %965 = vmatprep.subr.mxu0 0.0
    %966 = vmatpush1.msra.mxu0 %v918
    %967 = vmatprep.subr.mxu0 0.0
    %968 = vmatpush1.msra.mxu0 %v917
    %969 = vmatprep.subr.mxu0 0.0
    %970 = vmatpush1.msra.mxu0 %v916
    %971 = vmatprep.subr.mxu0 0.0
    %972 = vmatpush2.msra.mxu0 0.0
    %973 = vmatprep.subr.mxu0 0.0
    %974 = vmatpush2.msra.mxu0 0.0
    %975 = vmatprep.subr.mxu0 0.0
    %976 = vmatpush2.msra.mxu0 0.0
    %977 = vmatprep.subr.mxu0 0.0
    %978 = vmatpush2.msra.mxu0 0.0
    %979 = vmatprep.subr.mxu0 0.0
    %980 = vmatpush2.msra.mxu0 0.0
    %981 = vmatprep.subr.mxu0 0.0
    %982 = vmatpush2.msra.mxu0 0.0
    %983 = vmatprep.subr.mxu0 0.0
    %984 = vmatpush2.msra.mxu0 0.0
    %985 = vmatprep.subr.mxu0 0.0
    %986 = vmatpush2.msra.mxu0 0.0
    %987 = vmatprep.subr.mxu0 0.0
    %988 = vmatpush2.msra.mxu0 0.0
    %989 = vmatprep.subr.mxu0 0.0
    %990 = vmatpush2.msra.mxu0 0.0
    %991 = vmatprep.subr.mxu0 0.0
    %992 = vmatpush2.msra.mxu0 0.0
    %993 = vmatprep.subr.mxu0 0.0
    %994 = vmatpush2.msra.mxu0 0.0
    %995 = vmatprep.subr.mxu0 0.0
    %996 = vmatpush2.msra.mxu0 0.0
    %997 = vmatprep.subr.mxu0 0.0
    %998 = vmatpush2.msra.mxu0 0.0
    %999 = vmatprep.subr.mxu0 0.0
    %1000 = vmatpush2.msra.mxu0 0.0
    %1001 = vmatprep.subr.mxu0 0.0
    %1002 = vmatpush2.msra.mxu0 0.0
    %1003 = vmatprep.mubr.f32.mxu0 0.0
    %1004 = vmatmul.mubr.f32.gmra.mxu0 %v900
    %v1005 = vpop.f32.mrf.mxu0
    %v1006 = vadd.f32 %v937, %v1005
    %v1007 = vpop.f32.mrf.mxu0
    %1008 = vmatprep.mubr.f32.mxu0 0.0
    %1009 = vmatmul.mubr.f32.gmra.mxu0 %v901
    %v1010 = vpop.f32.mrf.mxu0
    %v1011 = vadd.f32 %v937, %v1010
    %v1012 = vpop.f32.mrf.mxu0
    %1013 = vmatprep.mubr.f32.mxu0 0.0
    %1014 = vmatmul.mubr.f32.gmra.mxu0 %v902
    %v1015 = vpop.f32.mrf.mxu0
    %v1016 = vadd.f32 %v937, %v1015
    %v1017 = vpop.f32.mrf.mxu0
    %1018 = vmatprep.mubr.f32.mxu0 0.0
    %1019 = vmatmul.mubr.f32.gmra.mxu0 %v903
    %v1020 = vpop.f32.mrf.mxu0
    %v1021 = vadd.f32 %v937, %v1020
    %v1022 = vpop.f32.mrf.mxu0
    %1023 = vmatprep.mubr.f32.mxu0 0.0
    %1024 = vmatmul.mubr.f32.gmra.mxu0 %v904
    %v1025 = vpop.f32.mrf.mxu0
    %v1026 = vadd.f32 %v937, %v1025
    %v1027 = vpop.f32.mrf.mxu0
    %1028 = vmatprep.mubr.f32.mxu0 0.0
    %1029 = vmatmul.mubr.f32.gmra.mxu0 %v905
    %v1030 = vpop.f32.mrf.mxu0
    %v1031 = vadd.f32 %v937, %v1030
    %v1032 = vpop.f32.mrf.mxu0
    %1033 = vmatprep.mubr.f32.mxu0 0.0
    %1034 = vmatmul.mubr.f32.gmra.mxu0 %v906
    %v1035 = vpop.f32.mrf.mxu0
    %v1036 = vadd.f32 %v937, %v1035
    %v1037 = vpop.f32.mrf.mxu0
    %1038 = vmatprep.mubr.f32.mxu0 0.0
    %1039 = vmatmul.mubr.f32.gmra.mxu0 %v907
    %v1040 = vpop.f32.mrf.mxu0
    %v1041 = vadd.f32 %v937, %v1040
    %v1042 = vpop.f32.mrf.mxu0
    %1043 = vmatprep.mubr.f32.mxu0 0.0
    %1044 = vmatmul.mubr.f32.gmra.mxu0 %v908
    %v1045 = vpop.f32.mrf.mxu0
    %v1046 = vadd.f32 %v937, %v1045
    %v1047 = vpop.f32.mrf.mxu0
    %1048 = vmatprep.mubr.f32.mxu0 0.0
    %1049 = vmatmul.mubr.f32.gmra.mxu0 %v909
    %v1050 = vpop.f32.mrf.mxu0
    %v1051 = vadd.f32 %v937, %v1050
    %v1052 = vpop.f32.mrf.mxu0
    %1053 = vmatprep.mubr.f32.mxu0 0.0
    %1054 = vmatmul.mubr.f32.gmra.mxu0 %v910
    %v1055 = vpop.f32.mrf.mxu0
    %v1056 = vadd.f32 %v937, %v1055
    %v1057 = vpop.f32.mrf.mxu0
    %1058 = vmatprep.mubr.f32.mxu0 0.0
    %1059 = vmatmul.mubr.f32.gmra.mxu0 %v911
    %v1060 = vpop.f32.mrf.mxu0
    %v1061 = vadd.f32 %v937, %v1060
    %v1062 = vpop.f32.mrf.mxu0
    %1063 = vmatprep.mubr.f32.mxu0 0.0
    %1064 = vmatmul.mubr.f32.gmra.mxu0 %v912
    %v1065 = vpop.f32.mrf.mxu0
    %v1066 = vadd.f32 %v937, %v1065
    %v1067 = vpop.f32.mrf.mxu0
    %1068 = vmatprep.mubr.f32.mxu0 0.0
    %1069 = vmatmul.mubr.f32.gmra.mxu0 %v913
    %v1070 = vpop.f32.mrf.mxu0
    %v1071 = vadd.f32 %v937, %v1070
    %v1072 = vpop.f32.mrf.mxu0
    %1073 = vmatprep.mubr.f32.mxu0 0.0
    %1074 = vmatmul.mubr.f32.gmra.mxu0 %v914
    %v1075 = vpop.f32.mrf.mxu0
    %v1076 = vadd.f32 %v937, %v1075
    %v1077 = vpop.f32.mrf.mxu0
    %1078 = vmatprep.mubr.f32.mxu0 0.0
    %1079 = vmatmul.mubr.f32.gmra.mxu0 %v915
    %v1080 = vpop.f32.mrf.mxu0
    %v1081 = vadd.f32 %v937, %v1080
    %v1082 = vpop.f32.mrf.mxu0
    %1083 = vdwg.mxu0
    %v1084 = vmax.f32 %v1006, 0.0
    %v1085 = vmax.f32 %v1011, 0.0
    %v1086 = vmax.f32 %v1016, 0.0
    %v1087 = vmax.f32 %v1021, 0.0
    %v1088 = vmax.f32 %v1026, 0.0
    %v1089 = vmax.f32 %v1031, 0.0
    %v1090 = vmax.f32 %v1036, 0.0
    %v1091 = vmax.f32 %v1041, 0.0
    %v1092 = vmax.f32 %v1046, 0.0
    %v1093 = vmax.f32 %v1051, 0.0
    %v1094 = vmax.f32 %v1056, 0.0
    %v1095 = vmax.f32 %v1061, 0.0
    %v1096 = vmax.f32 %v1066, 0.0
    %v1097 = vmax.f32 %v1071, 0.0
    %v1098 = vmax.f32 %v1076, 0.0
    %v1099 = vmax.f32 %v1081, 0.0
    %v1100 = vld [vmem:[%s5] sm:$0x1]
    %v1101 = vld [vmem:[#allocation2] sm:$0x1]
    %1103 = vset.pattern.permute.xlu0 0
    %1104 = vperm.xlu0 %1103, %v1101
    %v1105 = vpop.permute.xlu0 %1104
    %v1107 = vlaneseq
    %v1108 = vshrl.u32 %v1107, 7
    %v1109 = vsub.s32 0, %v1108
    %v1110 = vrot.slane %v1105, %v1109
    %vm1111 = vcmask 523264
    %v1113 = vsel %vm1111, %v1100, 0
    %v1116 = vsel %vm1111, %v1084, 0
    %v1119 = vsel %vm1111, %v1085, 0
    %v1122 = vsel %vm1111, %v1086, 0
    %v1125 = vsel %vm1111, %v1087, 0
    %v1128 = vsel %vm1111, %v1088, 0
    %v1131 = vsel %vm1111, %v1089, 0
    %v1134 = vsel %vm1111, %v1090, 0
    %v1137 = vsel %vm1111, %v1091, 0
    %v1140 = vsel %vm1111, %v1092, 0
    %v1143 = vsel %vm1111, %v1093, 0
    %v1146 = vsel %vm1111, %v1094, 0
    %v1149 = vsel %vm1111, %v1095, 0
    %v1152 = vsel %vm1111, %v1096, 0
    %v1155 = vsel %vm1111, %v1097, 0
    %v1158 = vsel %vm1111, %v1098, 0
    %v1161 = vsel %vm1111, %v1099, 0
    %1163 = vmatprep.subr.mxu0 0.0
    %1164 = vmatpush1.xpose.msra.mxu0 %v1161
    %1165 = vmatprep.subr.mxu0 0.0
    %1166 = vmatpush1.xpose.msra.mxu0 %v1158
    %1167 = vmatprep.subr.mxu0 0.0
    %1168 = vmatpush1.xpose.msra.mxu0 %v1155
    %1169 = vmatprep.subr.mxu0 0.0
    %1170 = vmatpush1.xpose.msra.mxu0 %v1152
    %1171 = vmatprep.subr.mxu0 0.0
    %1172 = vmatpush1.xpose.msra.mxu0 %v1149
    %1173 = vmatprep.subr.mxu0 0.0
    %1174 = vmatpush1.xpose.msra.mxu0 %v1146
    %1175 = vmatprep.subr.mxu0 0.0
    %1176 = vmatpush1.xpose.msra.mxu0 %v1143
    %1177 = vmatprep.subr.mxu0 0.0
    %1178 = vmatpush1.xpose.msra.mxu0 %v1140
    %1179 = vmatprep.subr.mxu0 0.0
    %1180 = vmatpush1.xpose.msra.mxu0 %v1137
    %1181 = vmatprep.subr.mxu0 0.0
    %1182 = vmatpush1.xpose.msra.mxu0 %v1134
    %1183 = vmatprep.subr.mxu0 0.0
    %1184 = vmatpush1.xpose.msra.mxu0 %v1131
    %1185 = vmatprep.subr.mxu0 0.0
    %1186 = vmatpush1.xpose.msra.mxu0 %v1128
    %1187 = vmatprep.subr.mxu0 0.0
    %1188 = vmatpush1.xpose.msra.mxu0 %v1125
    %1189 = vmatprep.subr.mxu0 0.0
    %1190 = vmatpush1.xpose.msra.mxu0 %v1122
    %1191 = vmatprep.subr.mxu0 0.0
    %1192 = vmatpush1.xpose.msra.mxu0 %v1119
    %1193 = vmatprep.subr.mxu0 0.0
    %1194 = vmatpush1.xpose.msra.mxu0 %v1116
    %1195 = vmatprep.subr.mxu0 0.0
    %1196 = vmatpush2.xpose.msra.mxu0 0.0
    %1197 = vmatprep.subr.mxu0 0.0
    %1198 = vmatpush2.xpose.msra.mxu0 0.0
    %1199 = vmatprep.subr.mxu0 0.0
    %1200 = vmatpush2.xpose.msra.mxu0 0.0
    %1201 = vmatprep.subr.mxu0 0.0
    %1202 = vmatpush2.xpose.msra.mxu0 0.0
    %1203 = vmatprep.subr.mxu0 0.0
    %1204 = vmatpush2.xpose.msra.mxu0 0.0
    %1205 = vmatprep.subr.mxu0 0.0
    %1206 = vmatpush2.xpose.msra.mxu0 0.0
    %1207 = vmatprep.subr.mxu0 0.0
    %1208 = vmatpush2.xpose.msra.mxu0 0.0
    %1209 = vmatprep.subr.mxu0 0.0
    %1210 = vmatpush2.xpose.msra.mxu0 0.0
    %1211 = vmatprep.subr.mxu0 0.0
    %1212 = vmatpush2.xpose.msra.mxu0 0.0
    %1213 = vmatprep.subr.mxu0 0.0
    %1214 = vmatpush2.xpose.msra.mxu0 0.0
    %1215 = vmatprep.subr.mxu0 0.0
    %1216 = vmatpush2.xpose.msra.mxu0 0.0
    %1217 = vmatprep.subr.mxu0 0.0
    %1218 = vmatpush2.xpose.msra.mxu0 0.0
    %1219 = vmatprep.subr.mxu0 0.0
    %1220 = vmatpush2.xpose.msra.mxu0 0.0
    %1221 = vmatprep.subr.mxu0 0.0
    %1222 = vmatpush2.xpose.msra.mxu0 0.0
    %1223 = vmatprep.subr.mxu0 0.0
    %1224 = vmatpush2.xpose.msra.mxu0 0.0
    %1225 = vmatprep.subr.mxu0 0.0
    %1226 = vmatpush2.xpose.msra.mxu0 0.0
    %1227 = vmatprep.mubr.f32.mxu0 0.0
    %1228 = vmatmul.mubr.f32.gmra.mxu0 %v1113
    %v1229 = vpop.f32.mrf.mxu0
    %v1230 = vadd.f32 %v1110, %v1229
    %v1231 = vpop.f32.mrf.mxu0
    %1232 = vdwg.mxu0
    %1233 = vst [vmem:[#allocation8] sm:$0x1] %v1230
    // Predicated region
    $region38: #{tpu_custom_call.1} parent=1 // pred_check
      _
    $region39: #{tpu_custom_call.1} parent=1 // pred_check_branch
      %1235 = sbr.rel (0) target = $region41
    $region40: #{tpu_custom_call.1} parent=1 // pred_region
      %s1237 = ssub.s32 16, 16
      %1238 = vsyncadd [#allocation5], %s1237
      %s1240 = sshll.u32 [#allocation8], 4
      %s1241 = int_to_ptr.vmem [resolvable:$true] %s1240
      %1243 = dma.vmem_to_hbm [thread:$0]  %s1241, 16, %s7, [#allocation5]
    $region41: #{tpu_custom_call.1} parent=1 // pred_fallthru
      _
    // Predicated region
    $region42: #{tpu_custom_call.1} parent=1 // pred_check
      _
    $region43: #{tpu_custom_call.1} parent=1 // pred_check_branch
      %1245 = sbr.rel (0) target = $region45
    $region44: #{tpu_custom_call.1} parent=1 // pred_region
      %1246 = dma.done [#allocation5], 16
    $region45: #{tpu_custom_call.1} parent=1 // pred_fallthru
      _
    %1247 = vsyncpa [#allocation4], 1
    %1248 = vsyncpa [#allocation7], 1
    %1249 = vsyncpa [#allocation5], 1

</llo_original>
